<compile_context>
chip_gen: v5e
topology: v5e:2x2
jax: 0.10.0
libtpu: 0.0.40
codegen_flags: <defaults>
</compile_context>

<pallas_src>
import jax
import jax.numpy as jnp
from jax import lax
from jax.experimental import pallas as pl
from jax.experimental.pallas import tpu as pltpu

_LANE = 128  # vreg lane width


# ----------------------------------------------------------------------------
# Stage 1: streaming spatial max-pool  (B, C, H*W) -> (B*S, 1, C) partial maxes
# ----------------------------------------------------------------------------
def _make_max_pool_kernel(*, hw, hw_t, chunk, n_s, need_mask, neutral, nacc):
    n_full = hw_t // chunk
    rem = hw_t - n_full * chunk
    # rem > 0 only happens in the single-tile case (hw_t == hw, n_s == 1).
    assert rem == 0 or n_s == 1
    unroll_static = n_full <= max(nacc, 8)

    def kernel(x_ref, o_ref, acc_ref):
        # x_ref   : (1, C, hw_t)  one batch element, one spatial tile
        # o_ref   : (1, 1, C)     partial max for this (batch, split)
        # acc_ref : (1, C, chunk) streaming max accumulator (input dtype)
        p = pl.program_id(1)   # spatial split index
        s = pl.program_id(2)   # spatial step within the split

        @pl.when(s == 0)
        def _init():
            acc_ref[...] = jnp.full(acc_ref.shape, neutral, acc_ref.dtype)

        base = (p * n_s + s) * hw_t  # logical element offset of this tile in H*W
        if need_mask:
            lane = lax.broadcasted_iota(jnp.int32, acc_ref.shape, 2)

        def fold(acc, off):
            """Max-fold the `chunk`-wide slice at offset `off` (static or traced)."""
            start = off if isinstance(off, int) else pl.multiple_of(off, chunk)
            c = x_ref[:, :, pl.ds(start, chunk)]
            if need_mask:
                # Mask lanes past the valid H*W extent (ragged tail / phantom tiles).
                c = jnp.where(lane < (hw - base - off), c,
                              jnp.asarray(neutral, dtype=c.dtype))
            return jnp.maximum(acc, c)

        if unroll_static:
            # Short static unroll: serial max chain is fine for few chunks.
            acc = acc_ref[...]
            for i in range(n_full):
                acc = fold(acc, i * chunk)
            acc_ref[...] = acc
        else:
            # Many chunks: fori_loop over groups of `nacc` independent
            # accumulators (ILP for the 4 VALU slots), then pairwise tree fold.
            n_groups = n_full // nacc
            tail = n_full - n_groups * nacc

            def group(g, accs):
                return tuple(fold(accs[j], (g * nacc + j) * chunk)
                             for j in range(nacc))

            accs = (acc_ref[...],) + tuple(
                jnp.full(acc_ref.shape, neutral, acc_ref.dtype)
                for _ in range(nacc - 1))
            accs = list(lax.fori_loop(0, n_groups, group, accs))
            for j in range(tail):
                accs[j] = fold(accs[j], (n_groups * nacc + j) * chunk)
            while len(accs) > 1:  # pairwise tree fold
                nxt = [jnp.maximum(accs[k], accs[k + 1])
                       for k in range(0, len(accs) - 1, 2)]
                if len(accs) % 2:
                    nxt.append(accs[-1])
                accs = nxt
            acc_ref[...] = accs[0]

        @pl.when(s == pl.num_programs(2) - 1)
        def _finalize():
            pooled = jnp.max(acc_ref[...], axis=-1)                      # (1, C)
            if rem > 0:  # static remainder slice; only in the single-tile case
                t = x_ref[:, :, pl.ds(n_full * chunk, rem)]
                pooled = jnp.maximum(pooled, jnp.max(t, axis=-1))
            o_ref[...] = pooled.reshape(o_ref.shape).astype(o_ref.dtype)

    return kernel


# ----------------------------------------------------------------------------
# Stage 2: combine split partials + fc1 / ReLU / fc2 / sigmoid, batched over B
# ----------------------------------------------------------------------------
def _mlp_kernel(partial_ref, w1t_ref, w2t_ref, o_ref):
    # partial_ref: (B, S, C); w1t: (C, C_hidden); w2t: (C_hidden, C); o: (B, C)
    pooled = jnp.max(partial_ref[...].astype(jnp.float32), axis=1)       # (B, C)
    h = jnp.dot(pooled, w1t_ref[...].astype(jnp.float32),
                preferred_element_type=jnp.float32)
    h = jnp.maximum(h, 0.0)
    logits = jnp.dot(h, w2t_ref[...].astype(jnp.float32),
                     preferred_element_type=jnp.float32)
    o_ref[...] = jax.nn.sigmoid(logits).astype(o_ref.dtype)


# ----------------------------------------------------------------------------
# Wrapper
# ----------------------------------------------------------------------------
def channel_attention(x_nchw, w1, w2, *, max_spatial_tile=None, spatial_splits=None):
    """x_nchw: (B, C, H, W); w1: (C//r, C); w2: (C, C//r). Returns (B, C, 1, 1)."""
    B, C, H, W = x_nchw.shape
    C_hidden = w1.shape[0]
    assert w1.shape == (C_hidden, C) and w2.shape == (C, C_hidden)

    HW = H * W
    x_flat = x_nchw.reshape(B, C, HW)
    dtype = x_flat.dtype
    itemsize = dtype.itemsize

    if jnp.issubdtype(dtype, jnp.floating):
        neutral = float("-inf")
    else:
        neutral = int(jnp.iinfo(dtype).min)

    # --- generation-aware VMEM budget --------------------------------------
    try:
        vmem_cap = int(pltpu.get_tpu_info().vmem_capacity_bytes)
    except Exception:
        vmem_cap = 64 << 20  # conservative fallback (v7x per-TC)
    per_buf_budget = max(4 << 20, vmem_cap // 8)  # ~16 MiB v5e/v6e, ~8 MiB v7x

    lane_cap = max(_LANE, (per_buf_budget // max(1, C * itemsize)) // _LANE * _LANE)
    if max_spatial_tile is not None:
        lane_cap = min(lane_cap, max(_LANE, (int(max_spatial_tile) // _LANE) * _LANE))

    if HW <= lane_cap:
        hw_t = HW  # single tile: block == full dim, no 128 alignment needed
    else:
        hw_t = lane_cap
        t = hw_t
        while t >= max(_LANE, hw_t // 2):  # prefer a divisor of HW (no masking)
            if HW % t == 0:
                hw_t = t
                break
            t -= _LANE

    n_t = pl.cdiv(HW, hw_t)  # number of real spatial tiles

    if spatial_splits is None:
        spatial_splits = 2 if B == 1 else 1  # keep both v7x TCs busy for tiny batch
    S = max(1, min(int(spatial_splits), n_t))
    n_s = pl.cdiv(n_t, S)
    need_mask = (n_t * hw_t != HW) or (S * n_s != n_t)

    chunk = _LANE if hw_t >= _LANE else hw_t
    # Independent accumulators: keep nacc * (C/8 vregs) comfortably inside 64 vregs.
    nacc = max(1, min(8, 192 // max(1, C)))

    kernel = _make_max_pool_kernel(hw=HW, hw_t=hw_t, chunk=chunk, n_s=n_s,
                                   need_mask=need_mask, neutral=neutral, nacc=nacc)

    tile_bytes = C * hw_t * itemsize
    vmem_limit = int(min(vmem_cap * 4 // 5,
                         max(32 << 20, 2 * tile_bytes + (6 << 20))))

    def x_map(b, p, s):
        # Clamp phantom tile indices so the DMA stays in bounds; the kernel's
        # masking (based on the unclamped logical index) neutralizes the data.
        return (b, 0, jnp.minimum(p * n_s + s, n_t - 1))

    def o_map(b, p, s):
        return (b * S + p, 0, 0)

    cost = pl.CostEstimate(
        flops=int(B * C * HW),
        transcendentals=0,
        bytes_accessed=int(B * C * HW * itemsize + B * S * C * itemsize),
    )

    partial = pl.pallas_call(
        kernel,
        out_shape=jax.ShapeDtypeStruct((B * S, 1, C), dtype),
        grid_spec=pltpu.PrefetchScalarGridSpec(
            num_scalar_prefetch=0,
            grid=(B, S, n_s),
            in_specs=[pl.BlockSpec((1, C, hw_t), x_map)],
            out_specs=pl.BlockSpec((1, 1, C), o_map),
            scratch_shapes=[pltpu.VMEM((1, C, chunk), dtype)],
        ),
        compiler_params=pltpu.CompilerParams(
            dimension_semantics=("parallel", "parallel", "arbitrary"),
            vmem_limit_bytes=vmem_limit,
        ),
        cost_estimate=cost,
    )(x_flat)

    partial = partial.reshape(B, S, C)

    # Pre-transpose weights in the wrapper (layout plumbing, no in-kernel XLU .T).
    w1t = jnp.transpose(w1)  # (C, C_hidden)
    w2t = jnp.transpose(w2)  # (C_hidden, C)

    att = pl.pallas_call(
        _mlp_kernel,
        out_shape=jax.ShapeDtypeStruct((B, C), dtype),
    )(partial, w1t, w2t)

    return att.reshape(B, C, 1, 1)


# ----------------------------------------------------------------------------
if __name__ == "__main__":
    key = jax.random.PRNGKey(0)

    def make_case(k, B, C, H, W, ratio=1):
        kx, k1, k2 = jax.random.split(k, 3)
        Ch = C // ratio
        x = jax.random.normal(kx, (B, C, H, W), dtype=jnp.float32)
        w1 = jax.random.normal(k1, (Ch, C), dtype=jnp.float32) * 0.1
        w2 = jax.random.normal(k2, (C, Ch), dtype=jnp.float32) * 0.1
        return x, w1, w2

    def reference(x, w1, w2):
        B, C = x.shape[0], x.shape[1]
        pooled = jnp.max(x.reshape(B, C, -1), axis=-1)
        h = jnp.maximum(pooled @ w1.T, 0.0)
        return jax.nn.sigmoid(h @ w2.T).reshape(B, C, 1, 1)

    keys = jax.random.split(key, 3)

    # 1) Baseline small shape: single tile, static chunk loop.
    x, w1, w2 = make_case(keys[0], 2, 4, 16, 16)
    ref = reference(x, w1, w2)
    out = jax.block_until_ready(channel_attention(x, w1, w2))
    assert out.shape == (2, 4, 1, 1)
    assert jnp.allclose(out, ref, atol=1e-5, rtol=1e-5), "mismatch (baseline)"

    # 2a) Forced multi-step streaming accumulation across the spatial grid axis.
    out = jax.block_until_ready(channel_attention(x, w1, w2, max_spatial_tile=128))
    assert jnp.allclose(out, ref, atol=1e-5, rtol=1e-5), "mismatch (streaming)"

    # 2b) Two-way parallel spatial split + partial-max combine.
    out = jax.block_until_ready(
        channel_attention(x, w1, w2, max_spatial_tile=128, spatial_splits=2))
    assert jnp.allclose(out, ref, atol=1e-5, rtol=1e-5), "mismatch (split)"

    # 3) Ragged H*W tail + phantom split tiles: in-kernel masking + clamped index map.
    x3, w13, w23 = make_case(keys[1], 1, 8, 36, 36)
    out3 = jax.block_until_ready(
        channel_attention(x3, w13, w23, max_spatial_tile=256, spatial_splits=4))
    assert jnp.allclose(out3, reference(x3, w13, w23), atol=1e-5, rtol=1e-5), \
        "mismatch (masked/phantom)"

    # 4) Many chunks per tile + ragged tail: exercises fori/tree reduction path.
    x4, w14, w24 = make_case(keys[2], 1, 8, 50, 50)
    out4 = jax.block_until_ready(
        channel_attention(x4, w14, w24, max_spatial_tile=1280))
    assert jnp.allclose(out4, reference(x4, w14, w24), atol=1e-5, rtol=1e-5), \
        "mismatch (fori/tree)"

    print("KERNEL_OK")
</pallas_src>

<mosaic_0001>
module attributes {stable_mosaic.version = 11 : i64} {
  func.func @kernel(%arg0: i32, %arg1: i32, %arg2: i32, %arg3: memref<1x4x256xf32, #tpu.memory_space<vmem>>, %arg4: memref<1x1x4xf32, #tpu.memory_space<vmem>>, %arg5: memref<1x4x128xf32, #tpu.memory_space<vmem>>) attributes {dimension_semantics = [#tpu.dimension_semantics<parallel>, #tpu.dimension_semantics<parallel>, #tpu.dimension_semantics<arbitrary>], iteration_bounds = array<i64: 2, 1, 1>, scalar_prefetch = 0 : i64, scratch_operands = 1 : i64, tpu.core_type = #tpu.core_type<tc>, window_params = [{transform_indices = @transform_0, window_bounds = array<i64: 1, 4, 256>}, {transform_indices = @transform_1, window_bounds = array<i64: 1, 1, 4>}]} {
    %c0_i32 = arith.constant 0 : i32
    %0 = arith.cmpi eq, %arg2, %c0_i32 : i32
    %1 = arith.extui %0 : i1 to i32
    %c0_i32_0 = arith.constant 0 : i32
    %2 = arith.cmpi ne, %1, %c0_i32_0 : i32
    scf.if %2 {
      %cst = arith.constant 0xFF800000 : f32
      %12 = vector.broadcast %cst : f32 to vector<1x4x128xf32>
      %c0_13 = arith.constant 0 : index
      %c0_14 = arith.constant 0 : index
      %c0_15 = arith.constant 0 : index
      %13 = vector.load %arg5[%c0_13, %c0_14, %c0_15] : memref<1x4x128xf32, #tpu.memory_space<vmem>>, vector<1x4x128xf32>
      tpu.vector_store %arg5[%c0_13, %c0_14, %c0_15], %12 {strides = array<i32>} : memref<1x4x128xf32, #tpu.memory_space<vmem>>, vector<1x4x128xf32>,
    } else {
    }
    %c0 = arith.constant 0 : index
    %c0_1 = arith.constant 0 : index
    %c0_2 = arith.constant 0 : index
    %3 = vector.load %arg5[%c0, %c0_1, %c0_2] : memref<1x4x128xf32, #tpu.memory_space<vmem>>, vector<1x4x128xf32>
    %c0_3 = arith.constant 0 : index
    %c0_4 = arith.constant 0 : index
    %c0_5 = arith.constant 0 : index
    %4 = vector.load %arg3[%c0_3, %c0_4, %c0_5] : memref<1x4x256xf32, #tpu.memory_space<vmem>>, vector<1x4x128xf32>
    %5 = arith.maximumf %3, %4 : vector<1x4x128xf32>
    %c0_6 = arith.constant 0 : index
    %c0_7 = arith.constant 0 : index
    %c128 = arith.constant 128 : index
    %6 = vector.load %arg3[%c0_6, %c0_7, %c128] : memref<1x4x256xf32, #tpu.memory_space<vmem>>, vector<1x4x128xf32>
    %7 = arith.maximumf %5, %6 : vector<1x4x128xf32>
    %c0_8 = arith.constant 0 : index
    %c0_9 = arith.constant 0 : index
    %c0_10 = arith.constant 0 : index
    %8 = vector.load %arg5[%c0_8, %c0_9, %c0_10] : memref<1x4x128xf32, #tpu.memory_space<vmem>>, vector<1x4x128xf32>
    tpu.vector_store %arg5[%c0_8, %c0_9, %c0_10], %7 {strides = array<i32>} : memref<1x4x128xf32, #tpu.memory_space<vmem>>, vector<1x4x128xf32>,
    %c0_i32_11 = arith.constant 0 : i32
    %9 = arith.cmpi eq, %arg2, %c0_i32_11 : i32
    %10 = arith.extui %9 : i1 to i32
    %c0_i32_12 = arith.constant 0 : i32
    %11 = arith.cmpi ne, %10, %c0_i32_12 : i32
    scf.if %11 {
      %c0_13 = arith.constant 0 : index
      %c0_14 = arith.constant 0 : index
      %c0_15 = arith.constant 0 : index
      %12 = vector.load %arg5[%c0_13, %c0_14, %c0_15] : memref<1x4x128xf32, #tpu.memory_space<vmem>>, vector<1x4x128xf32>
      %cst = arith.constant dense<0xFF800000> : vector<1x4xf32>
      %13 = vector.multi_reduction <maximumf>, %12, %cst [2] : vector<1x4x128xf32> to vector<1x4xf32>
      %14 = vector.shape_cast %13 : vector<1x4xf32> to vector<1x1x4xf32>
      %c0_16 = arith.constant 0 : index
      %c0_17 = arith.constant 0 : index
      %c0_18 = arith.constant 0 : index
      %15 = vector.load %arg4[%c0_16, %c0_17, %c0_18] : memref<1x1x4xf32, #tpu.memory_space<vmem>>, vector<1x1x4xf32>
      tpu.vector_store %arg4[%c0_16, %c0_17, %c0_18], %14 {strides = array<i32>} : memref<1x1x4xf32, #tpu.memory_space<vmem>>, vector<1x1x4xf32>,
    } else {
    }
    return
  }
  func.func @transform_0(%arg0: i32, %arg1: i32, %arg2: i32) -> (i32, i32, i32) {
    %c1_i32 = arith.constant 1 : i32
    %0 = arith.muli %arg1, %c1_i32 : i32
    %1 = arith.addi %0, %arg2 : i32
    %c0_i32 = arith.constant 0 : i32
    %2 = arith.minsi %1, %c0_i32 : i32
    %c0_i32_0 = arith.constant 0 : i32
    %c0_i32_1 = arith.constant 0 : i32
    return %arg0, %c0_i32_0, %2 : i32, i32, i32
  }
  func.func @transform_1(%arg0: i32, %arg1: i32, %arg2: i32) -> (i32, i32, i32) {
    %c1_i32 = arith.constant 1 : i32
    %0 = arith.muli %arg0, %c1_i32 : i32
    %1 = arith.addi %0, %arg1 : i32
    %c0_i32 = arith.constant 0 : i32
    %c0_i32_0 = arith.constant 0 : i32
    %c0_i32_1 = arith.constant 0 : i32
    return %1, %c0_i32, %c0_i32_0 : i32, i32, i32
  }
}

</mosaic_0001>

<llo_original>
// kernel: tpu_custom_call.1
$region0: #{tpu_custom_call.1}
  #allocation0 [shape = 'u32[]', space=smem, size = 0x4, offset = 0x4, fixed_abs, tag = 'smem constant byte address 0x4 - core index']
  #allocation1 [shape = 'u32[72,128]{1,0:T(1,128)}', space=vmem, size = 0x9000, scoped, tag = 'internal scratch']
  #allocation2 [shape = 'f32[1,4,128]{2,1,0:T(4,128)}', space=vmem, size = 0x800, scoped, tag = 'scratch operand']
  %s0 = inlined_call_operand.hbm [shape: f32[2,4,256], index: 0, kind: input, shape index: {}]
  %s1 = inlined_call_operand.hbm [shape: f32[2,1,4], index: 1, kind: output, shape index: {}]
  %s2 = sld [smem:[#allocation0]]
  $region49: #{tpu_custom_call.1} parent=0
    _
  %s4 = ssub.s32 1, %s2
  %s5 = scalar_select 0, %s4, %s2
  $region1: #{tpu_custom_call.1} parent=0
    #allocation3 [shape = 'u8[8192]{0}', space=vmem, size = 0x2000, scoped, tag = 'input window, operand 0']
    #allocation4 [shape = 's32[2]{0}', space=sflag, size = 0x8, scoped, tag = 'scoped memory for tpu_custom_call.1']
    #allocation5 [shape = 's32[2]{0}', space=sflag, size = 0x8, scoped, tag = 'scoped memory for tpu_custom_call.1']
    #allocation6 [shape = 'u8[1024]{0}', space=vmem, size = 0x400, scoped, tag = 'output window, operand 0']
    %6 = vsyncpa [#allocation4], 0
    %s7 = scalar_lea.sflag [#allocation4], 1
    %8 = vsyncpa %s7, 0
    %9 = vsyncpa [#allocation5], 0
    %s10 = scalar_lea.sflag [#allocation5], 1
    %11 = vsyncpa %s10, 0
    loop: start=0, step=1, limit=4
    $region2: #{tpu_custom_call.1} parent=1 // loop_pre_header
      _
    $region3: #{tpu_custom_call.1} parent=1 // loop_header
      %s13 = sphi 0, %s17
      %p14 = scmp.ge.s32.totalorder %s13, 4
      %s20 = sphi 0, %s39
      %s21 = sphi 0, %s35
      %s22 = sphi 0, %s31
      %s23 = sphi 0, %s20
      %s24 = sphi 0, %s21
      %s25 = sphi 0, %s22
      %s26 = sphi 0, %s23
      %s27 = sphi 0, %s24
      %s28 = sphi 0, %s25
      %s50 = sphi 0, %s52
      %s53 = sphi 0, %s50
      %s54 = sphi 0, %s53
      %s70 = sphi 0, %s54
      %s78 = sphi 0, %s80
      %s81 = sphi 0, %s78
      %s82 = sphi 0, %s81
      %s98 = sphi 0, %s82
    $region4: #{tpu_custom_call.1} parent=1 // loop_header_branch
      %16 = sbr.rel (%p14) target = $region8
    $region5: #{tpu_custom_call.1} parent=1 // loop_body
      %s18 = ssub.s32 %s13, 1
      %s19 = ssub.s32 %s13, 2
      %s29 = sadd.s32 1, %s22
      %p30 = scmp.ge.s32.totalorder %s29, 1
      %s31 = scalar_select %p30, 0, %s29
      %s32 = sadd.s32 1, %s21
      %s33 = scalar_select %p30, %s32, %s21
      %p34 = scmp.ge.s32.totalorder %s33, 1
      %s35 = scalar_select %p34, 0, %s33
      %s36 = sadd.s32 1, %s20
      %s37 = scalar_select %p34, %s36, %s20
      %p38 = scmp.ge.s32.totalorder %s37, 2
      %s39 = scalar_select %p38, 0, %s37
      %s40 = sadd.s32 %s21, %s22
      %p41 = scmp.lt.s32.totalorder %s40, 0
      %s42 = scalar_select %p41, %s40, 0
      %s43 = sadd.s32 %s35, %s31
      %p44 = scmp.lt.s32.totalorder %s43, 0
      %s45 = scalar_select %p44, %s43, 0
      %s46 = ssub.s32 %s20, %s39
      %s47 = ssub.s32 %s42, %s45
      %s48 = sor.u32 %s46, %s47
      %p49 = scmp.eq.s32.totalorder %s48, 0
      %s51 = sadd.s32 %s50, 1
      %s52 = scalar_select %p49, %s50, %s51
      %p55 = pneg %p49
      %p56 = scmp.eq.s32.totalorder %s13, 1
      %p57 = por %p55, %p56
      %p58 = scmp.ne.s32.totalorder %s50, %s53
      %p59 = scmp.eq.s32.totalorder %s13, 0
      %p60 = por %p58, %p59
      %p61 = scmp.ne.s32.totalorder %s50, %s53
      %p62 = scmp.eq.s32.totalorder %s18, 1
      %p63 = por %p61, %p62
      %p64 = scmp.ne.s32.totalorder %s53, %s54
      %p65 = scmp.eq.s32.totalorder %s18, 0
      %p66 = por %p64, %p65
      %p67 = scmp.ne.s32.totalorder %s53, %s54
      %p68 = scmp.eq.s32.totalorder %s19, 1
      %p69 = por %p67, %p68
      %p71 = scmp.ne.s32.totalorder %s54, %s70
      %p72 = scmp.eq.s32.totalorder %s19, 0
      %p73 = por %p71, %p72
      %s74 = sadd.s32 %s20, %s21
      %s75 = sadd.s32 %s39, %s35
      %s76 = ssub.s32 %s74, %s75
      %p77 = scmp.eq.s32.totalorder %s76, 0
      %s79 = sadd.s32 %s78, 1
      %s80 = scalar_select %p77, %s78, %s79
      %p83 = pneg %p77
      %p84 = scmp.eq.s32.totalorder %s13, 1
      %p85 = por %p83, %p84
      %p86 = scmp.ne.s32.totalorder %s78, %s81
      %p87 = scmp.eq.s32.totalorder %s13, 0
      %p88 = por %p86, %p87
      %p89 = scmp.ne.s32.totalorder %s78, %s81
      %p90 = scmp.eq.s32.totalorder %s18, 1
      %p91 = por %p89, %p90
      %p92 = scmp.ne.s32.totalorder %s81, %s82
      %p93 = scmp.eq.s32.totalorder %s18, 0
      %p94 = por %p92, %p93
      %p95 = scmp.ne.s32.totalorder %s81, %s82
      %p96 = scmp.eq.s32.totalorder %s19, 1
      %p97 = por %p95, %p96
      %p99 = scmp.ne.s32.totalorder %s82, %s98
      %p100 = scmp.eq.s32.totalorder %s19, 0
      %p101 = por %p99, %p100
      %p102 = scmp.le.s32.totalorder 1, %s13
      %p103 = scmp.lt.s32.totalorder %s13, 3
      %p104 = pnand %p102, %p103
      %p105 = pneg %p104
      // Predicated region
      $region9: #{tpu_custom_call.1} parent=5 // pred_check
        _
      $region10: #{tpu_custom_call.1} parent=5 // pred_check_branch
        %107 = sbr.rel (%p104) target = $region12
      $region11: #{tpu_custom_call.1} parent=5 // pred_region
        %s108 = ssub.s32 %s13, 1
      $region12: #{tpu_custom_call.1} parent=5 // pred_fallthru
        _
      %p109 = scmp.lt.s32.totalorder %s13, 2
      // Predicated region
      $region13: #{tpu_custom_call.1} parent=5 // pred_check
        %p110 = pneg %p109
      $region14: #{tpu_custom_call.1} parent=5 // pred_check_branch
        %112 = sbr.rel (%p110) target = $region16
      $region15: #{tpu_custom_call.1} parent=5 // pred_region
        // Predicated region
        $region17: #{tpu_custom_call.1} parent=15 // pred_check
          %p113 = pneg %p60
        $region18: #{tpu_custom_call.1} parent=15 // pred_check_branch
          %115 = sbr.rel (%p113) target = $region20
        $region19: #{tpu_custom_call.1} parent=15 // pred_region
          %s116 = sand.u32 %s50, 1
          %s117 = scalar_lea.sflag [#allocation4], %s116
          %s118 = sand.u32 %s50, 1
          %s119 = smul.addr %s118, 8
          %s120 = scalar_lea.vmem [#allocation3], %s119
          %s121 = sadd.s32 %s21, %s22
          %p122 = scmp.lt.s32.totalorder %s121, 0
          %s123 = scalar_select %p122, %s121, 0
          %s124 = smul.u32 2, %s123
          %126 = vsyncadd %s117, 0
          %s127 = smul.addr %s20, 2
          %s128 = sadd.s32 %s124, %s127
          %s129 = smul.addr %s128, 4
          %s130 = scalar_lea.hbm %s0, %s129
          %s132 = sshll.u32 %s130, 4
          %s133 = int_to_ptr.hbm [resolvable:$true] %s132
          %s134 = sshll.u32 %s120, 4
          %s135 = int_to_ptr.vmem [resolvable:$true] %s134
          %137 = dma.hbm_to_vmem [thread:$0]  %s133, 128, %s135, %s117
        $region20: #{tpu_custom_call.1} parent=15 // pred_fallthru
          _
      $region16: #{tpu_custom_call.1} parent=5 // pred_fallthru
        _
      %p138 = scmp.le.s32.totalorder 1, %s13
      %p139 = scmp.lt.s32.totalorder %s13, 3
      %p140 = pnand %p138, %p139
      %p141 = pneg %p140
      // Predicated region
      $region21: #{tpu_custom_call.1} parent=5 // pred_check
        _
      $region22: #{tpu_custom_call.1} parent=5 // pred_check_branch
        %143 = sbr.rel (%p140) target = $region24
      $region23: #{tpu_custom_call.1} parent=5 // pred_region
        %s144 = ssub.s32 %s13, 1
        %s145 = sand.u32 %s53, 1
        %s146 = scalar_lea.sflag [#allocation4], %s145
        %s147 = sand.u32 %s53, 1
        %s148 = smul.addr %s147, 8
        %s149 = scalar_lea.vmem [#allocation3], %s148
        // Predicated region
        $region25: #{tpu_custom_call.1} parent=23 // pred_check
          %p150 = pneg %p66
        $region26: #{tpu_custom_call.1} parent=23 // pred_check_branch
          %152 = sbr.rel (%p150) target = $region28
        $region27: #{tpu_custom_call.1} parent=23 // pred_region
          %154 = dma.done %s146, 128
        $region28: #{tpu_custom_call.1} parent=23 // pred_fallthru
          _
        %s155 = sand.u32 %s53, 1
        %s156 = scalar_lea.sflag [#allocation4], %s155
        %s157 = sand.u32 %s53, 1
        %s158 = smul.addr %s157, 8
        %s159 = scalar_lea.vmem [#allocation3], %s158
        %p160 = pneg %p66
        %p161 = pneg %p63
        %p162 = pneg %p94
        %p163 = pneg %p91
        %s164 = sand.u32 %s81, 1
        %s165 = scalar_lea.sflag [#allocation5], %s164
        %s166 = sand.u32 %s81, 1
        %s167 = scalar_lea.vmem [#allocation6], %s166
        %s168 = sadd.s32 %s24, %s25
        %p169 = scmp.lt.s32.totalorder %s168, 0
        %s170 = scalar_select %p169, %s168, 0
        %s171 = smul.u32 2, %s170
        %s172 = sadd.s32 %s23, %s24
        %p173 = scmp.eq.s32.totalorder %s25, 0
        // Predicated region
        $region29: #{tpu_custom_call.1} parent=23 // pred_check
          %p174 = pneg %p173
        $region30: #{tpu_custom_call.1} parent=23 // pred_check_branch
          %176 = sbr.rel (%p174) target = $region32
        $region31: #{tpu_custom_call.1} parent=23 // pred_region
          %177 = vst [vmem:[#allocation2] sm:$0xf] -inf
        $region32: #{tpu_custom_call.1} parent=23 // pred_fallthru
          _
        %v178 = vld [vmem:[#allocation2] sm:$0xf]
        %v179 = vld [vmem:[%s149] sm:$0xf]
        %v180 = vmax.f32 %v178, %v179
        %v181 = vld [vmem:[%s149 + $0x4] sm:$0xf]
        %v182 = vmax.f32 %v180, %v181
        %183 = vst [vmem:[#allocation2] sm:$0xf] %v182
        // Predicated region
        $region33: #{tpu_custom_call.1} parent=23 // pred_check
          %p184 = pneg %p173
        $region34: #{tpu_custom_call.1} parent=23 // pred_check_branch
          %186 = sbr.rel (%p184) target = $region36
        $region35: #{tpu_custom_call.1} parent=23 // pred_region
          %v187 = vld [vmem:[#allocation2] sm:$0xf]
          %vm188 = vcmask 1043456
          %v189 = vsel %vm188, %v187, -inf
          %190 = vmax.xlane.f32.xlu0 %v189
          %v191 = vpop.xlane.xlu0 %190
          %v193 = vlaneseq
          %v194 = vand.u32 %v193, 127
          %v195 = vperm.slane %v191, %v194
          %vm197 = vcmask 24576
          %198 = vst.msk [vmem:[%s167] sm:$0x1] %vm197, %v195
        $region36: #{tpu_custom_call.1} parent=23 // pred_fallthru
          _
        %s199 = sand.u32 %s81, 1
        %s200 = scalar_lea.sflag [#allocation5], %s199
        %s201 = sand.u32 %s81, 1
        %s202 = scalar_lea.vmem [#allocation6], %s201
        // Predicated region
        $region37: #{tpu_custom_call.1} parent=23 // pred_check
          %p203 = pneg %p91
        $region38: #{tpu_custom_call.1} parent=23 // pred_check_branch
          %205 = sbr.rel (%p203) target = $region40
        $region39: #{tpu_custom_call.1} parent=23 // pred_region
          %s206 = sadd.s32 %s23, %s24
          %208 = vsyncadd %s200, 0
          %s209 = scalar_lea.hbm %s1, %s206
          %s211 = sshll.u32 %s202, 4
          %s212 = int_to_ptr.vmem [resolvable:$true] %s211
          %s213 = sshll.u32 %s209, 4
          %s214 = int_to_ptr.hbm [resolvable:$true] %s213
          %216 = dma.vmem_to_hbm [thread:$0]  %s212, 16, %s214, %s200
        $region40: #{tpu_custom_call.1} parent=23 // pred_fallthru
          _
      $region24: #{tpu_custom_call.1} parent=5 // pred_fallthru
        _
      %p217 = scmp.le.s32.totalorder 2, %s13
      // Predicated region
      $region41: #{tpu_custom_call.1} parent=5 // pred_check
        %p218 = pneg %p217
      $region42: #{tpu_custom_call.1} parent=5 // pred_check_branch
        %220 = sbr.rel (%p218) target = $region44
      $region43: #{tpu_custom_call.1} parent=5 // pred_region
        %s221 = ssub.s32 %s13, 2
        // Predicated region
        $region45: #{tpu_custom_call.1} parent=43 // pred_check
          %p222 = pneg %p97
        $region46: #{tpu_custom_call.1} parent=43 // pred_check_branch
          %224 = sbr.rel (%p222) target = $region48
        $region47: #{tpu_custom_call.1} parent=43 // pred_region
          %s225 = sand.u32 %s82, 1
          %s226 = scalar_lea.sflag [#allocation5], %s225
          %s227 = sand.u32 %s82, 1
          %s228 = scalar_lea.vmem [#allocation6], %s227
          %230 = dma.done %s226, 16
        $region48: #{tpu_custom_call.1} parent=43 // pred_fallthru
          _
      $region44: #{tpu_custom_call.1} parent=5 // pred_fallthru
        _
    $region6: #{tpu_custom_call.1} parent=1 // loop_footer
      %s17 = sadd.s32 1, %s13
    $region7: #{tpu_custom_call.1} parent=1 // loop_footer_branch
      %12 = sbr.rel target = $region3
    $region8: #{tpu_custom_call.1} parent=1 // loop_exit
      _
    %231 = vsyncpa [#allocation4], 1
    %s232 = scalar_lea.sflag [#allocation4], 1
    %233 = vsyncpa %s232, 1
    %234 = vsyncpa [#allocation5], 1
    %s235 = scalar_lea.sflag [#allocation5], 1
    %236 = vsyncpa %s235, 1

</llo_original>
